<compile_context>
chip_gen: v5e
topology: v5e:2x2
jax: 0.10.0
libtpu: 0.0.40
codegen_flags: <defaults>
</compile_context>

<pallas_src>
import functools

import jax
import jax.numpy as jnp
from jax.experimental import pallas as pl
from jax.experimental.pallas import tpu as pltpu

LANE = 128          # vreg lane width — all weight output dims padded to this
ROW_ALIGN = 16      # sublane alignment of slab segments (covers bf16 packing)
HIDDEN1 = 64
HIDDEN2 = 32


def _round_up(v, m):
    return ((v + m - 1) // m) * m


def dueling_dqn_kernel(x_ref, w_ref, out_ref, *, state_size, action_size,
                       r_b1, r_w2, r_wh):
    x = x_ref[...]                                   # [TB, S]  (compute dtype)

    # Static, sublane-aligned views into the single packed weight slab.
    w1 = w_ref[0:state_size, :]                      # [S, 128]
    b1 = w_ref[r_b1:r_b1 + 1, :]                     # [1, 128] (lane 127 == 1 carrier)
    w2 = w_ref[r_w2:r_w2 + LANE, :]                  # [128, 128] (b2 in row 127)
    wh = w_ref[r_wh:r_wh + LANE, :]                  # [128, 128] (head bias in row 127)

    # fc1 + relu.  Lanes >= 64 are exactly 0, except carrier lane 127 == 1.
    h1 = jnp.dot(x, w1, preferred_element_type=jnp.float32) + b1.astype(jnp.float32)
    h1 = jnp.maximum(h1, 0.0)                        # [TB, 128] f32

    # fc2 + relu; b2 folded in via the carrier lane.  Lanes >= 32 are 0,
    # carrier lane 127 == 1 again.
    h2 = jnp.dot(h1.astype(w_ref.dtype), w2, preferred_element_type=jnp.float32)
    h2 = jnp.maximum(h2, 0.0)                        # [TB, 128] f32

    # Fused value|advantage head (advantage-first): cols 0..A-1 = advantage,
    # col A = value, remaining lanes = 0; biases folded via carrier row 127.
    head = jnp.dot(h2.astype(w_ref.dtype), wh, preferred_element_type=jnp.float32)

    adv = head[:, 0:action_size]                     # lane-aligned valid slice
    value = head[:, action_size:action_size + 1]     # [TB, 1]
    # sum * (1/A) == mean exactly for power-of-two A; ~1 ulp otherwise.
    adv_mean = jnp.sum(adv, axis=1, keepdims=True) * (1.0 / action_size)
    corr = value - adv_mean                          # single per-row scalar

    # Lane-dense store of the full 128-wide block (unmasked vst, dense DMA);
    # the wrapper slices [:, :A].  Lanes >= A carry junk by design.
    out_ref[...] = head + corr


def pack_params(params, *, dtype=jnp.bfloat16):
    """Pack all weights/biases into one lane-dense slab.

    Row layout:
      [0, S)              : w1               (cols 0..63)
      [r_b1]              : b1               (cols 0..63) + carrier 1.0 at lane 127
      [r_w2, r_w2 + 128)  : w2               (cols 0..31); row 127 = b2, [127,127] = 1
      [r_wh, r_wh + 128)  : [wa | wv]        (cols 0..A);  row 127 = [ba | bv]
    """
    S = params["w1"].shape[0]
    A = params["wa"].shape[1]
    assert A + 1 <= LANE, "action_size + 1 must fit in one 128-lane vreg"
    assert HIDDEN1 < LANE and HIDDEN2 < LANE, "carrier lane 127 must stay free"

    r_b1 = _round_up(S, ROW_ALIGN)
    r_w2 = r_b1 + ROW_ALIGN
    r_wh = r_w2 + LANE
    n_rows = r_wh + LANE

    w = jnp.zeros((n_rows, LANE), jnp.float32)
    w = w.at[0:S, 0:HIDDEN1].set(params["w1"])
    w = w.at[r_b1, 0:HIDDEN1].set(params["b1"].reshape(-1))
    w = w.at[r_b1, LANE - 1].set(1.0)                              # carrier source
    w = w.at[r_w2:r_w2 + HIDDEN1, 0:HIDDEN2].set(params["w2"])
    w = w.at[r_w2 + LANE - 1, 0:HIDDEN2].set(params["b2"].reshape(-1))
    w = w.at[r_w2 + LANE - 1, LANE - 1].set(1.0)                   # carrier pass-through
    w = w.at[r_wh:r_wh + HIDDEN2, 0:A].set(params["wa"])
    w = w.at[r_wh:r_wh + HIDDEN2, A].set(params["wv"].reshape(-1))
    w = w.at[r_wh + LANE - 1, 0:A].set(params["ba"].reshape(-1))
    w = w.at[r_wh + LANE - 1, A].set(params["bv"].reshape(-1)[0])
    return w.astype(dtype), (r_b1, r_w2, r_wh)


def dueling_dqn_forward(x, params, *, tile_b=2048, compute_dtype=jnp.bfloat16):
    """x: [B, state_size].  Returns [B, action_size] float32."""
    B, S = x.shape
    A = params["wa"].shape[1]
    w, (r_b1, r_w2, r_wh) = pack_params(params, dtype=compute_dtype)

    # Batch tile selection:
    #  - B <= 256: single whole-batch block (acting path; grid of 1).
    #  - 256 < B <= tile_b: split into two blocks so the "parallel" axis can
    #    shard across v7x's two TensorCores (no-op on v5e/v6e).
    #  - larger: tile_b rows per step (amortizes ~0.35us/step pipeline overhead;
    #    working set at tb=2048 is ~6 MiB, safe under scoped VMEM on all gens).
    if B <= 256:
        tb = B
    elif B <= tile_b:
        tb = _round_up(pl.cdiv(B, 2), 8)
    else:
        tb = tile_b
    b_pad = _round_up(B, tb)

    x_in = x.astype(compute_dtype)          # halve HBM read bytes of the batch operand
    if b_pad != B:
        x_in = jnp.pad(x_in, ((0, b_pad - B), (0, 0)))

    kernel = functools.partial(dueling_dqn_kernel, state_size=S, action_size=A,
                               r_b1=r_b1, r_w2=r_w2, r_wh=r_wh)

    out_full = pl.pallas_call(
        kernel,
        out_shape=jax.ShapeDtypeStruct((b_pad, LANE), jnp.float32),
        grid_spec=pltpu.PrefetchScalarGridSpec(
            num_scalar_prefetch=0,
            grid=(b_pad // tb,),
            in_specs=[
                pl.BlockSpec((tb, S), lambda i: (i, 0)),     # x tile (double-buffered)
                pl.BlockSpec(w.shape, lambda i: (0, 0)),     # whole slab, VMEM-resident
            ],
            out_specs=pl.BlockSpec((tb, LANE), lambda i: (i, 0)),
        ),
        compiler_params=pltpu.CompilerParams(
            dimension_semantics=("parallel",)),
    )(x_in, w)

    return out_full[:B, :A]


def init_params(key, state_size, action_size):
    """Deterministic synthetic init (uniform, like PyTorch default range).
    Weights stored as [in, out] so the kernel computes x @ W + b."""
    def linear_init(k, fan_in, fan_out):
        k_w, k_b = jax.random.split(k)
        bound = 1.0 / jnp.sqrt(jnp.float32(fan_in))
        w = jax.random.uniform(k_w, (fan_in, fan_out), jnp.float32, -bound, bound)
        b = jax.random.uniform(k_b, (1, fan_out), jnp.float32, -bound, bound)
        return w, b

    k1, k2, k3, k4 = jax.random.split(key, 4)
    w1, b1 = linear_init(k1, state_size, HIDDEN1)
    w2, b2 = linear_init(k2, HIDDEN1, HIDDEN2)
    wv, bv = linear_init(k3, HIDDEN2, 1)
    wa, ba = linear_init(k4, HIDDEN2, action_size)
    return {"w1": w1, "b1": b1, "w2": w2, "b2": b2,
            "wv": wv, "bv": bv, "wa": wa, "ba": ba}


def dueling_dqn_reference(x, p, compute_dtype=jnp.float32):
    """Pure-JAX reference mirroring the PyTorch forward.  With
    compute_dtype=bfloat16 it mirrors the kernel's cast policy (bf16 at the
    dot inputs, f32 accumulate + f32 elementwise)."""
    c = lambda a: a.astype(compute_dtype)
    f32 = jnp.float32
    h1 = jnp.maximum(jnp.dot(c(x), c(p["w1"]), preferred_element_type=f32)
                     + c(p["b1"]).astype(f32), 0.0)
    h2 = jnp.maximum(jnp.dot(c(h1), c(p["w2"]), preferred_element_type=f32)
                     + c(p["b2"]).astype(f32), 0.0)
    value = jnp.dot(c(h2), c(p["wv"]), preferred_element_type=f32) + c(p["bv"]).astype(f32)
    adv = jnp.dot(c(h2), c(p["wa"]), preferred_element_type=f32) + c(p["ba"]).astype(f32)
    return value + (adv - adv.mean(axis=1, keepdims=True))


if __name__ == "__main__":
    B = 8            # batch (online acting path)
    STATE_SIZE = 16  # state_size
    ACTION_SIZE = 4  # action_size

    key = jax.random.PRNGKey(0)
    k_params, k_x = jax.random.split(key)
    params = init_params(k_params, STATE_SIZE, ACTION_SIZE)
    x = jax.random.normal(k_x, (B, STATE_SIZE), jnp.float32)

    out = dueling_dqn_forward(x, params)
    out = jax.block_until_ready(out)
    assert out.shape == (B, ACTION_SIZE)

    # Tight check vs a reference using the same bf16-at-dot-inputs policy.
    ref_bf16 = dueling_dqn_reference(x, params, compute_dtype=jnp.bfloat16)
    assert jnp.allclose(out, ref_bf16, atol=1e-4, rtol=1e-4), "mismatch vs bf16-policy reference"

    # Loose sanity check vs the pure-f32 PyTorch-equivalent forward.
    ref_f32 = dueling_dqn_reference(x, params, compute_dtype=jnp.float32)
    assert jnp.allclose(out, ref_f32, atol=5e-2, rtol=0.0), "mismatch vs f32 reference"

    print("KERNEL_OK")
</pallas_src>

<mosaic_0001>
module attributes {stable_mosaic.version = 11 : i64} {
  func.func @dueling_dqn_kernel(%arg0: i32, %arg1: memref<8x16xbf16, #tpu.memory_space<vmem>>, %arg2: memref<288x128xbf16, #tpu.memory_space<vmem>>, %arg3: memref<8x128xf32, #tpu.memory_space<vmem>>) attributes {dimension_semantics = [#tpu.dimension_semantics<parallel>], iteration_bounds = array<i64: 1>, scalar_prefetch = 0 : i64, scratch_operands = 0 : i64, tpu.core_type = #tpu.core_type<tc>, window_params = [{transform_indices = @transform_0, window_bounds = array<i64: 8, 16>}, {pipeline_mode = #tpu.pipeline_mode<synchronous>, transform_indices = @transform_1, window_bounds = array<i64: 288, 128>}, {transform_indices = @transform_2, window_bounds = array<i64: 8, 128>}]} {
    %c0 = arith.constant 0 : index
    %c0_0 = arith.constant 0 : index
    %0 = vector.load %arg1[%c0, %c0_0] : memref<8x16xbf16, #tpu.memory_space<vmem>>, vector<8x16xbf16>
    %c0_1 = arith.constant 0 : index
    %c0_2 = arith.constant 0 : index
    %1 = vector.load %arg2[%c0_1, %c0_2] : memref<288x128xbf16, #tpu.memory_space<vmem>>, vector<16x128xbf16>
    %c16 = arith.constant 16 : index
    %c0_3 = arith.constant 0 : index
    %2 = vector.load %arg2[%c16, %c0_3] : memref<288x128xbf16, #tpu.memory_space<vmem>>, vector<1x128xbf16>
    %c32 = arith.constant 32 : index
    %c0_4 = arith.constant 0 : index
    %3 = vector.load %arg2[%c32, %c0_4] : memref<288x128xbf16, #tpu.memory_space<vmem>>, vector<128x128xbf16>
    %c160 = arith.constant 160 : index
    %c0_5 = arith.constant 0 : index
    %4 = vector.load %arg2[%c160, %c0_5] : memref<288x128xbf16, #tpu.memory_space<vmem>>, vector<128x128xbf16>
    %cst = arith.constant dense<0.000000e+00> : vector<8x128xf32>
    %5 = tpu.matmul %0, %1, %cst {dimension_numbers = #tpu.dot_dimension_numbers<[1], [0], [0], [1], [0, 0, 1, 1], [], []>} : vector<8x16xbf16>, vector<16x128xbf16>, vector<8x128xf32> -> vector<8x128xf32>
    %6 = arith.extf %2 : vector<1x128xbf16> to vector<1x128xf32>
    %7 = vector.broadcast %6 : vector<1x128xf32> to vector<8x128xf32>
    %8 = arith.addf %5, %7 : vector<8x128xf32>
    %cst_6 = arith.constant 0.000000e+00 : f32
    %9 = vector.broadcast %cst_6 : f32 to vector<8x128xf32>
    %10 = arith.maximumf %8, %9 : vector<8x128xf32>
    %11 = arith.truncf %10 : vector<8x128xf32> to vector<8x128xbf16>
    %cst_7 = arith.constant dense<0.000000e+00> : vector<8x128xf32>
    %12 = tpu.matmul %11, %3, %cst_7 {dimension_numbers = #tpu.dot_dimension_numbers<[1], [0], [0], [1], [0, 0, 1, 1], [], []>} : vector<8x128xbf16>, vector<128x128xbf16>, vector<8x128xf32> -> vector<8x128xf32>
    %cst_8 = arith.constant 0.000000e+00 : f32
    %13 = vector.broadcast %cst_8 : f32 to vector<8x128xf32>
    %14 = arith.maximumf %12, %13 : vector<8x128xf32>
    %15 = arith.truncf %14 : vector<8x128xf32> to vector<8x128xbf16>
    %cst_9 = arith.constant dense<0.000000e+00> : vector<8x128xf32>
    %16 = tpu.matmul %15, %4, %cst_9 {dimension_numbers = #tpu.dot_dimension_numbers<[1], [0], [0], [1], [0, 0, 1, 1], [], []>} : vector<8x128xbf16>, vector<128x128xbf16>, vector<8x128xf32> -> vector<8x128xf32>
    %17 = vector.extract_strided_slice %16 {offsets = [0, 0], sizes = [8, 4], strides = [1, 1]} : vector<8x128xf32> to vector<8x4xf32>
    %18 = vector.extract_strided_slice %16 {offsets = [0, 4], sizes = [8, 1], strides = [1, 1]} : vector<8x128xf32> to vector<8x1xf32>
    %cst_10 = arith.constant dense<0.000000e+00> : vector<8xf32>
    %19 = vector.multi_reduction <add>, %17, %cst_10 [1] : vector<8x4xf32> to vector<8xf32>
    %20 = vector.shape_cast %19 : vector<8xf32> to vector<8x1xf32>
    %cst_11 = arith.constant 2.500000e-01 : f32
    %21 = vector.broadcast %cst_11 : f32 to vector<8x1xf32>
    %22 = arith.mulf %20, %21 : vector<8x1xf32>
    %23 = arith.subf %18, %22 : vector<8x1xf32>
    %24 = vector.broadcast %23 : vector<8x1xf32> to vector<8x128xf32>
    %25 = arith.addf %16, %24 : vector<8x128xf32>
    %c0_12 = arith.constant 0 : index
    %c0_13 = arith.constant 0 : index
    %26 = vector.load %arg3[%c0_12, %c0_13] : memref<8x128xf32, #tpu.memory_space<vmem>>, vector<8x128xf32>
    tpu.vector_store %arg3[%c0_12, %c0_13], %25 {strides = array<i32>} : memref<8x128xf32, #tpu.memory_space<vmem>>, vector<8x128xf32>,
    return
  }
  func.func @transform_0(%arg0: i32) -> (i32, i32) {
    %c0_i32 = arith.constant 0 : i32
    %c0_i32_0 = arith.constant 0 : i32
    return %arg0, %c0_i32 : i32, i32
  }
  func.func @transform_1(%arg0: i32) -> (i32, i32) {
    %c0_i32 = arith.constant 0 : i32
    %c0_i32_0 = arith.constant 0 : i32
    %c0_i32_1 = arith.constant 0 : i32
    return %c0_i32, %c0_i32_0 : i32, i32
  }
  func.func @transform_2(%arg0: i32) -> (i32, i32) {
    %c0_i32 = arith.constant 0 : i32
    %c0_i32_0 = arith.constant 0 : i32
    return %arg0, %c0_i32 : i32, i32
  }
}

</mosaic_0001>

<llo_original>
// kernel: tpu_custom_call.1
$region0: #{tpu_custom_call.1}
  #allocation0 [shape = 'u32[]', space=smem, size = 0x4, offset = 0x4, fixed_abs, tag = 'smem constant byte address 0x4 - core index']
  #allocation1 [shape = 'u32[72,128]{1,0:T(1,128)}', space=vmem, size = 0x9000, scoped, tag = 'internal scratch']
  %s0 = inlined_call_operand.hbm [shape: bf16[8,16], index: 0, kind: input, shape index: {}]
  %s1 = inlined_call_operand.hbm [shape: bf16[288,128], index: 1, kind: input, shape index: {}]
  %s2 = inlined_call_operand.hbm [shape: f32[8,128], index: 2, kind: output, shape index: {}]
  %s3 = sld [smem:[#allocation0]]
  $region26: #{tpu_custom_call.1} parent=0
    _
  %s5 = ssub.s32 1, %s3
  %s6 = scalar_select 0, %s5, %s3
  $region1: #{tpu_custom_call.1} parent=0
    #allocation2 [shape = 'u8[2048]{0}', space=vmem, size = 0x800, scoped, tag = 'input window, operand 0, single buffered']
    #allocation3 [shape = 's32[1]{0}', space=sflag, size = 0x4, scoped, tag = 'scoped memory for tpu_custom_call.1']
    #allocation4 [shape = 's32[1]{0}', space=sflag, size = 0x4, scoped, tag = 'scoped memory for tpu_custom_call.1']
    #allocation5 [shape = 'u8[73728]{0}', space=vmem, size = 0x12000, scoped, tag = 'input window, operand 1, single buffered']
    #allocation6 [shape = 's32[1]{0}', space=sflag, size = 0x4, scoped, tag = 'scoped memory for tpu_custom_call.1']
    #allocation7 [shape = 'u8[4096]{0}', space=vmem, size = 0x1000, scoped, tag = 'output window, operand 0, single buffered']
    %7 = vsyncpa [#allocation3], 0
    %8 = vsyncpa [#allocation6], 0
    %9 = vsyncpa [#allocation4], 0
    // Predicated region
    $region2: #{tpu_custom_call.1} parent=1 // pred_check
      _
    $region3: #{tpu_custom_call.1} parent=1 // pred_check_branch
      %11 = sbr.rel (0) target = $region5
    $region4: #{tpu_custom_call.1} parent=1 // pred_region
      %13 = vsyncadd [#allocation3], 0
      %s15 = sshll.u32 %s0, 4
      %s16 = int_to_ptr.hbm [resolvable:$true] %s15
      %s17 = sshll.u32 [#allocation2], 4
      %s18 = int_to_ptr.vmem [resolvable:$true] %s17
      %20 = dma.hbm_to_vmem [thread:$0]  %s16, 64, %s18, [#allocation3]
    $region5: #{tpu_custom_call.1} parent=1 // pred_fallthru
      _
    // Predicated region
    $region6: #{tpu_custom_call.1} parent=1 // pred_check
      _
    $region7: #{tpu_custom_call.1} parent=1 // pred_check_branch
      %22 = sbr.rel (0) target = $region9
    $region8: #{tpu_custom_call.1} parent=1 // pred_region
      %24 = vsyncadd [#allocation6], 0
      %s25 = sshll.u32 %s1, 4
      %s26 = int_to_ptr.hbm [resolvable:$true] %s25
      %s27 = sshll.u32 [#allocation5], 4
      %s28 = int_to_ptr.vmem [resolvable:$true] %s27
      %33 = dma.hbm_to_vmem [thread:$0]  %s26, 2304, %s28, [#allocation6], 64, 64, 4
    $region9: #{tpu_custom_call.1} parent=1 // pred_fallthru
      _
    // Predicated region
    $region10: #{tpu_custom_call.1} parent=1 // pred_check
      _
    $region11: #{tpu_custom_call.1} parent=1 // pred_check_branch
      %35 = sbr.rel (0) target = $region13
    $region12: #{tpu_custom_call.1} parent=1 // pred_region
      %37 = dma.done [#allocation3], 64
    $region13: #{tpu_custom_call.1} parent=1 // pred_fallthru
      _
    // Predicated region
    $region14: #{tpu_custom_call.1} parent=1 // pred_check
      _
    $region15: #{tpu_custom_call.1} parent=1 // pred_check_branch
      %39 = sbr.rel (0) target = $region17
    $region16: #{tpu_custom_call.1} parent=1 // pred_region
      %41 = dma.done [#allocation6], 2304
    $region17: #{tpu_custom_call.1} parent=1 // pred_fallthru
      _
    %v43 = vld [vmem:[#allocation2] sm:$0xf]
    %v44 = vld [vmem:[#allocation5] sm:$0xf]
    %v45 = vld [vmem:[#allocation5 + $0x4] sm:$0xf]
    %v46 = vld [vmem:[#allocation5 + $0x8] sm:$0x1]
    %v47 = vld [vmem:[#allocation5 + $0x10] sm:$0xf]
    %v48 = vld [vmem:[#allocation5 + $0x14] sm:$0xf]
    %v49 = vld [vmem:[#allocation5 + $0x18] sm:$0xf]
    %v50 = vld [vmem:[#allocation5 + $0x1c] sm:$0xf]
    %v51 = vld [vmem:[#allocation5 + $0x20] sm:$0xf]
    %v52 = vld [vmem:[#allocation5 + $0x24] sm:$0xf]
    %v53 = vld [vmem:[#allocation5 + $0x28] sm:$0xf]
    %v54 = vld [vmem:[#allocation5 + $0x2c] sm:$0xf]
    %v55 = vld [vmem:[#allocation5 + $0x30] sm:$0xf]
    %v56 = vld [vmem:[#allocation5 + $0x34] sm:$0xf]
    %v57 = vld [vmem:[#allocation5 + $0x38] sm:$0xf]
    %v58 = vld [vmem:[#allocation5 + $0x3c] sm:$0xf]
    %v59 = vld [vmem:[#allocation5 + $0x40] sm:$0xf]
    %v60 = vld [vmem:[#allocation5 + $0x44] sm:$0xf]
    %v61 = vld [vmem:[#allocation5 + $0x48] sm:$0xf]
    %v62 = vld [vmem:[#allocation5 + $0x4c] sm:$0xf]
    %v63 = vld [vmem:[#allocation5 + $0x50] sm:$0xf]
    %v64 = vld [vmem:[#allocation5 + $0x54] sm:$0xf]
    %v65 = vld [vmem:[#allocation5 + $0x58] sm:$0xf]
    %v66 = vld [vmem:[#allocation5 + $0x5c] sm:$0xf]
    %v67 = vld [vmem:[#allocation5 + $0x60] sm:$0xf]
    %v68 = vld [vmem:[#allocation5 + $0x64] sm:$0xf]
    %v69 = vld [vmem:[#allocation5 + $0x68] sm:$0xf]
    %v70 = vld [vmem:[#allocation5 + $0x6c] sm:$0xf]
    %v71 = vld [vmem:[#allocation5 + $0x70] sm:$0xf]
    %v72 = vld [vmem:[#allocation5 + $0x74] sm:$0xf]
    %v73 = vld [vmem:[#allocation5 + $0x78] sm:$0xf]
    %v74 = vld [vmem:[#allocation5 + $0x7c] sm:$0xf]
    %v75 = vld [vmem:[#allocation5 + $0x80] sm:$0xf]
    %v76 = vld [vmem:[#allocation5 + $0x84] sm:$0xf]
    %v77 = vld [vmem:[#allocation5 + $0x88] sm:$0xf]
    %v78 = vld [vmem:[#allocation5 + $0x8c] sm:$0xf]
    %v79 = vunpack.c.l.bf16 %v46
    %v80 = vperm.slane %v79, 0
    %v83 = vunpack.c.l.b16 %v44
    %v84 = vunpack.c.l.b16 %v45
    %v85 = vpack.c.b16 %v84, %v83
    %vm87 = vcmask 130048
    %v89 = vsel %vm87, %v43, 0
    %91 = vmatpush.bf16.msra.mxu0 0
    %92 = vmatpush.bf16.msra.mxu0 0
    %93 = vmatpush.bf16.msra.mxu0 0
    %94 = vmatpush.bf16.msra.mxu0 0
    %95 = vmatpush.bf16.msra.mxu0 0
    %96 = vmatpush.bf16.msra.mxu0 0
    %97 = vmatpush.bf16.msra.mxu0 0
    %98 = vmatpush.bf16.msra.mxu0 %v85
    %99 = vmatmul.bf16.gmra.mxu0 %v89
    %v100 = vpop.f32.mrf.mxu0
    %v101 = vadd.f32 %v80, %v100
    %v102 = vpop.f32.mrf.mxu0
    %103 = vdwg.mxu0
    %v104 = vmax.f32 %v101, 0.0
    %v105 = vpack.c.bf16 %v104, %v104
    %v122 = vunpack.c.l.b16 %v47
    %v123 = vunpack.c.l.b16 %v48
    %v124 = vunpack.c.l.b16 %v49
    %v125 = vunpack.c.l.b16 %v50
    %v126 = vunpack.c.l.b16 %v51
    %v127 = vunpack.c.l.b16 %v52
    %v128 = vunpack.c.l.b16 %v53
    %v129 = vunpack.c.l.b16 %v54
    %v130 = vunpack.c.l.b16 %v55
    %v131 = vunpack.c.l.b16 %v56
    %v132 = vunpack.c.l.b16 %v57
    %v133 = vunpack.c.l.b16 %v58
    %v134 = vunpack.c.l.b16 %v59
    %v135 = vunpack.c.l.b16 %v60
    %v136 = vunpack.c.l.b16 %v61
    %v137 = vunpack.c.l.b16 %v62
    %v138 = vpack.c.b16 %v123, %v122
    %v139 = vpack.c.b16 %v125, %v124
    %v140 = vpack.c.b16 %v127, %v126
    %v141 = vpack.c.b16 %v129, %v128
    %v142 = vpack.c.b16 %v131, %v130
    %v143 = vpack.c.b16 %v133, %v132
    %v144 = vpack.c.b16 %v135, %v134
    %v145 = vpack.c.b16 %v137, %v136
    %154 = vmatpush.bf16.msra.mxu0 %v145
    %155 = vmatpush.bf16.msra.mxu0 %v144
    %156 = vmatpush.bf16.msra.mxu0 %v143
    %157 = vmatpush.bf16.msra.mxu0 %v142
    %158 = vmatpush.bf16.msra.mxu0 %v141
    %159 = vmatpush.bf16.msra.mxu0 %v140
    %160 = vmatpush.bf16.msra.mxu0 %v139
    %161 = vmatpush.bf16.msra.mxu0 %v138
    %162 = vmatmul.bf16.gmra.mxu0 %v105
    %v163 = vpop.f32.mrf.mxu0
    %v164 = vadd.f32 0.0, %v163
    %v165 = vpop.f32.mrf.mxu0
    %166 = vdwg.mxu0
    %v167 = vmax.f32 %v164, 0.0
    %v168 = vpack.c.bf16 %v167, %v167
    %v185 = vunpack.c.l.b16 %v63
    %v186 = vunpack.c.l.b16 %v64
    %v187 = vunpack.c.l.b16 %v65
    %v188 = vunpack.c.l.b16 %v66
    %v189 = vunpack.c.l.b16 %v67
    %v190 = vunpack.c.l.b16 %v68
    %v191 = vunpack.c.l.b16 %v69
    %v192 = vunpack.c.l.b16 %v70
    %v193 = vunpack.c.l.b16 %v71
    %v194 = vunpack.c.l.b16 %v72
    %v195 = vunpack.c.l.b16 %v73
    %v196 = vunpack.c.l.b16 %v74
    %v197 = vunpack.c.l.b16 %v75
    %v198 = vunpack.c.l.b16 %v76
    %v199 = vunpack.c.l.b16 %v77
    %v200 = vunpack.c.l.b16 %v78
    %v201 = vpack.c.b16 %v186, %v185
    %v202 = vpack.c.b16 %v188, %v187
    %v203 = vpack.c.b16 %v190, %v189
    %v204 = vpack.c.b16 %v192, %v191
    %v205 = vpack.c.b16 %v194, %v193
    %v206 = vpack.c.b16 %v196, %v195
    %v207 = vpack.c.b16 %v198, %v197
    %v208 = vpack.c.b16 %v200, %v199
    %217 = vmatpush.bf16.msra.mxu0 %v208
    %218 = vmatpush.bf16.msra.mxu0 %v207
    %219 = vmatpush.bf16.msra.mxu0 %v206
    %220 = vmatpush.bf16.msra.mxu0 %v205
    %221 = vmatpush.bf16.msra.mxu0 %v204
    %222 = vmatpush.bf16.msra.mxu0 %v203
    %223 = vmatpush.bf16.msra.mxu0 %v202
    %224 = vmatpush.bf16.msra.mxu0 %v201
    %225 = vmatmul.bf16.gmra.mxu0 %v168
    %v226 = vpop.f32.mrf.mxu0
    %v227 = vadd.f32 0.0, %v226
    %v228 = vpop.f32.mrf.mxu0
    %229 = vdwg.mxu0
    %vm230 = vcmask 31744
    %v231 = vsel %vm230, %v227, 0.0
    %232 = vadd.xlane.f32.xlu0 %v231
    %v233 = vpop.xlane.xlu0 %232
    %v234 = vmul.f32 %v233, 0.25
    %v235 = vsub.f32 %v227, %v234
    %237 = vset.pattern.permute.xlu0 4
    %238 = vperm.xlu0 %237, %v235
    %v239 = vpop.permute.xlu0 %238
    %v241 = vadd.f32 %v227, %v239
    %242 = vst [vmem:[#allocation7] sm:$0xff] %v241
    // Predicated region
    $region18: #{tpu_custom_call.1} parent=1 // pred_check
      _
    $region19: #{tpu_custom_call.1} parent=1 // pred_check_branch
      %244 = sbr.rel (0) target = $region21
    $region20: #{tpu_custom_call.1} parent=1 // pred_region
      %246 = vsyncadd [#allocation4], 0
      %s248 = sshll.u32 [#allocation7], 4
      %s249 = int_to_ptr.vmem [resolvable:$true] %s248
      %s250 = sshll.u32 %s2, 4
      %s251 = int_to_ptr.hbm [resolvable:$true] %s250
      %253 = dma.vmem_to_hbm [thread:$0]  %s249, 128, %s251, [#allocation4]
    $region21: #{tpu_custom_call.1} parent=1 // pred_fallthru
      _
    // Predicated region
    $region22: #{tpu_custom_call.1} parent=1 // pred_check
      _
    $region23: #{tpu_custom_call.1} parent=1 // pred_check_branch
      %255 = sbr.rel (0) target = $region25
    $region24: #{tpu_custom_call.1} parent=1 // pred_region
      %257 = dma.done [#allocation4], 128
    $region25: #{tpu_custom_call.1} parent=1 // pred_fallthru
      _
    %258 = vsyncpa [#allocation3], 1
    %259 = vsyncpa [#allocation6], 1
    %260 = vsyncpa [#allocation4], 1

</llo_original>
